<compile_context>
chip_gen: v7x
topology: tpu7x:2x2x1
jax: 0.10.0
libtpu: 0.0.40
codegen_flags: <defaults>
</compile_context>

<pallas_src>
import jax
import jax.numpy as jnp
from jax.experimental import pallas as pl
from jax.experimental.pallas import tpu as pltpu

EPS = 1e-5
H1, H2 = 1024, 256


def mediumnet_kernel(x_ref, w0_ref, g2_ref, be2_ref,
                     w3_hbm, g3_ref, be3_ref,
                     w4_ref, b4_ref, o_ref,
                     w3_vmem, w3_sem):
    # Kick off the w3 HBM->VMEM DMA first so it overlaps lin0 + BN2 compute.
    w3_copy = pltpu.make_async_copy(w3_hbm, w3_vmem, w3_sem)
    w3_copy.start()

    # ---- lin0: x cast on the vreg path (w0 already stored bf16), f32 MXU acc.
    #      Bias b0 omitted: exactly cancelled by training-mode BN mean.
    h = jnp.dot(x_ref[...].astype(jnp.bfloat16), w0_ref[...],
                preferred_element_type=jnp.float32)

    inv_b = 1.0 / h.shape[0]

    # ---- BN2: one-pass moments, folded scale/shift, ReLU (all f32).
    s = jnp.sum(h, axis=0, keepdims=True)
    s2 = jnp.sum(h * h, axis=0, keepdims=True)
    mu = s * inv_b
    var = s2 * inv_b - mu * mu
    scale = g2_ref[...] * jax.lax.rsqrt(var + EPS)          # rsqrt -> EUP slot
    h = jnp.maximum((h - mu) * scale + be2_ref[...], 0.0)

    # ---- lin3: wait for w3 just-in-time; bias b3 omitted (BN cancellation).
    w3_copy.wait()
    h2 = jnp.dot(h.astype(jnp.bfloat16), w3_vmem[...],
                 preferred_element_type=jnp.float32)

    # ---- BN3 + ReLU (same one-pass folding).
    s3 = jnp.sum(h2, axis=0, keepdims=True)
    s4 = jnp.sum(h2 * h2, axis=0, keepdims=True)
    mu2 = s3 * inv_b
    var2 = s4 * inv_b - mu2 * mu2
    scale2 = g3_ref[...] * jax.lax.rsqrt(var2 + EPS)
    h2 = jnp.maximum((h2 - mu2) * scale2 + be3_ref[...], 0.0)

    # ---- lin4 (out_features=1): VPU multiply + lane reduction; b4 is an
    #      SMEM scalar.
    o_ref[...] = jnp.sum(h2 * w4_ref[...], axis=-1, keepdims=True) + b4_ref[0]


def prepare_params(params):
    """One-time weight prep OUTSIDE the hot path: bf16 weight storage,
    row-vector w4, 1-D scalar b4.  b0/b3 dropped (exactly cancelled by
    training-mode BatchNorm mean subtraction)."""
    (w0, b0, g2, be2, w3, b3, g3, be3, w4, b4) = params
    del b0, b3
    return (w0.astype(jnp.bfloat16), g2, be2,
            w3.astype(jnp.bfloat16), g3, be3,
            w4.reshape(1, -1), b4.reshape(-1))


def mediumnet_forward(x, prepared):
    (w0, g2, be2, w3, g3, be3, w4_row, b4) = prepared
    B, in_dim = x.shape

    def full_spec(shape):
        return pl.BlockSpec(shape, lambda: (0,) * len(shape))

    vmem_args = (x, w0, g2, be2, g3, be3, w4_row)
    vmem_in_bytes = int(sum(a.size * a.dtype.itemsize for a in vmem_args))
    scratch_bytes = H1 * H2 * 2                               # w3 bf16 landing buffer
    interm_bytes = B * H1 * (4 + 4 + 2) + B * H2 * (4 + 4)    # h, temps, bf16 h, h2
    out_bytes = B * 4
    footprint = vmem_in_bytes + scratch_bytes + interm_bytes + out_bytes
    vmem_limit = int(min(32 << 20, max(4 << 20, 3 * footprint)))

    hbm_bytes = vmem_in_bytes + H1 * H2 * 2 + b4.size * 4 + out_bytes
    flops = 2 * B * (in_dim * H1 + H1 * H2 + H2) + 12 * B * (H1 + H2)
    cost = pl.CostEstimate(flops=int(flops),
                           transcendentals=H1 + H2,
                           bytes_accessed=int(hbm_bytes))

    return pl.pallas_call(
        mediumnet_kernel,
        out_shape=jax.ShapeDtypeStruct((B, 1), jnp.float32),
        in_specs=[
            full_spec(x.shape),                                 # x (f32, cast in-kernel)
            full_spec(w0.shape),                                # w0 bf16
            full_spec(g2.shape), full_spec(be2.shape),          # BN2 affine
            pl.BlockSpec(memory_space=pl.ANY),                  # w3 stays in HBM
            full_spec(g3.shape), full_spec(be3.shape),          # BN3 affine
            full_spec(w4_row.shape),                            # w4 row vector
            pl.BlockSpec(memory_space=pltpu.MemorySpace.SMEM),  # b4 scalar
        ],
        out_specs=full_spec((B, 1)),
        scratch_shapes=[pltpu.VMEM((H1, H2), jnp.bfloat16),
                        pltpu.SemaphoreType.DMA(())],
        compiler_params=pltpu.CompilerParams(vmem_limit_bytes=vmem_limit),
        cost_estimate=cost,
    )(x, w0, g2, be2, w3, g3, be3, w4_row, b4)


def init_params(key, in_dim):
    ks = jax.random.split(key, 6)

    def linear(kw, kb, fan_in, fan_out):
        bound = 1.0 / jnp.sqrt(fan_in)
        # stored as (in_features, out_features) so the kernel does x @ W
        w = jax.random.uniform(kw, (fan_in, fan_out), jnp.float32, -bound, bound)
        b = jax.random.uniform(kb, (1, fan_out), jnp.float32, -bound, bound)
        return w, b

    w0, b0 = linear(ks[0], ks[1], in_dim, H1)
    w3, b3 = linear(ks[2], ks[3], H1, H2)
    w4, b4 = linear(ks[4], ks[5], H2, 1)

    # BatchNorm1d default affine init: gamma = 1, beta = 0
    g2 = jnp.ones((1, H1), jnp.float32)
    be2 = jnp.zeros((1, H1), jnp.float32)
    g3 = jnp.ones((1, H2), jnp.float32)
    be3 = jnp.zeros((1, H2), jnp.float32)
    return (w0, b0, g2, be2, w3, b3, g3, be3, w4, b4)


def reference_forward_f32(x, params):
    """Pure f32 reference with the exact PyTorch-module structure (biases kept)."""
    (w0, b0, g2, be2, w3, b3, g3, be3, w4, b4) = params

    def bn_relu(h, g, be):
        mu = jnp.mean(h, axis=0, keepdims=True)
        var = jnp.mean((h - mu) ** 2, axis=0, keepdims=True)
        return jnp.maximum((h - mu) / jnp.sqrt(var + EPS) * g + be, 0.0)

    h = bn_relu(x @ w0 + b0, g2, be2)
    h = bn_relu(h @ w3 + b3, g3, be3)
    return h @ w4 + b4


def reference_forward_matched(x, params):
    """Reference using the same bf16 matmul operands / folded BN as the kernel,
    but with b0/b3 still added — demonstrates that dropping them is exact."""
    (w0, b0, g2, be2, w3, b3, g3, be3, w4, b4) = params

    def bn_relu(h, g, be):
        mu = jnp.mean(h, axis=0, keepdims=True)
        hc = h - mu
        var = jnp.mean(hc * hc, axis=0, keepdims=True)
        return jnp.maximum(hc * (g * jax.lax.rsqrt(var + EPS)) + be, 0.0)

    h = jnp.dot(x.astype(jnp.bfloat16), w0.astype(jnp.bfloat16),
                preferred_element_type=jnp.float32) + b0
    h = bn_relu(h, g2, be2)
    h = jnp.dot(h.astype(jnp.bfloat16), w3.astype(jnp.bfloat16),
                preferred_element_type=jnp.float32) + b3
    h = bn_relu(h, g3, be3)
    return jnp.sum(h * w4.reshape(1, -1), axis=-1, keepdims=True) + b4


if __name__ == "__main__":
    B, IN_DIM = 8, 32
    key = jax.random.PRNGKey(0)
    kx, kp = jax.random.split(key)
    x = jax.random.normal(kx, (B, IN_DIM), jnp.float32)
    params = init_params(kp, IN_DIM)

    prepared = prepare_params(params)      # one-time, outside the hot path
    out = jax.block_until_ready(mediumnet_forward(x, prepared))
    assert out.shape == (B, 1) and out.dtype == jnp.float32

    # Tight check vs. a reference doing near-identical math (validates kernel).
    ref_m = reference_forward_matched(x, params)
    assert jnp.allclose(out, ref_m, atol=5e-3, rtol=5e-3), (out, ref_m)

    # Looser check vs. the pure-f32 PyTorch-semantics reference (bf16 matmul
    # operands introduce a small, expected numerical difference).
    ref_f32 = reference_forward_f32(x, params)
    assert jnp.allclose(out, ref_f32, atol=5e-2, rtol=5e-2), (out, ref_f32)

    print("KERNEL_OK")
</pallas_src>

<mosaic_0001>
module attributes {stable_mosaic.version = 11 : i64} {
  func.func @mediumnet_kernel(%arg0: memref<8x32xf32, #tpu.memory_space<vmem>>, %arg1: memref<32x1024xbf16, #tpu.memory_space<vmem>>, %arg2: memref<1x1024xf32, #tpu.memory_space<vmem>>, %arg3: memref<1x1024xf32, #tpu.memory_space<vmem>>, %arg4: memref<1024x256xbf16, #tpu.memory_space<any>>, %arg5: memref<1x256xf32, #tpu.memory_space<vmem>>, %arg6: memref<1x256xf32, #tpu.memory_space<vmem>>, %arg7: memref<1x256xf32, #tpu.memory_space<vmem>>, %arg8: memref<1xf32, #tpu.memory_space<smem>>, %arg9: memref<8x1xf32, #tpu.memory_space<vmem>>, %arg10: memref<1024x256xbf16, #tpu.memory_space<vmem>>, %arg11: memref<!tpu.dma_semaphore, #tpu.memory_space<semaphore_mem>>) attributes {dimension_semantics = [], scalar_prefetch = 0 : i64, scratch_operands = 2 : i64, tpu.core_type = #tpu.core_type<tc>} {
    tpu.enqueue_dma source(%arg4 : memref<1024x256xbf16, #tpu.memory_space<any>>) target(%arg10 : memref<1024x256xbf16, #tpu.memory_space<vmem>>) target_semaphore(%arg11 : memref<!tpu.dma_semaphore, #tpu.memory_space<semaphore_mem>>)
    %c0 = arith.constant 0 : index
    %c0_0 = arith.constant 0 : index
    %0 = vector.load %arg0[%c0, %c0_0] : memref<8x32xf32, #tpu.memory_space<vmem>>, vector<8x32xf32>
    %1 = arith.truncf %0 : vector<8x32xf32> to vector<8x32xbf16>
    %c0_1 = arith.constant 0 : index
    %c0_2 = arith.constant 0 : index
    %2 = vector.load %arg1[%c0_1, %c0_2] : memref<32x1024xbf16, #tpu.memory_space<vmem>>, vector<32x1024xbf16>
    %cst = arith.constant dense<0.000000e+00> : vector<8x1024xf32>
    %3 = tpu.matmul %1, %2, %cst {dimension_numbers = #tpu.dot_dimension_numbers<[1], [0], [0], [1], [0, 0, 1, 1], [], []>} : vector<8x32xbf16>, vector<32x1024xbf16>, vector<8x1024xf32> -> vector<8x1024xf32>
    %cst_3 = arith.constant dense<0.000000e+00> : vector<1024xf32>
    %4 = vector.multi_reduction <add>, %3, %cst_3 [0] : vector<8x1024xf32> to vector<1024xf32>
    %5 = vector.shape_cast %4 : vector<1024xf32> to vector<1x1024xf32>
    %6 = arith.mulf %3, %3 : vector<8x1024xf32>
    %cst_4 = arith.constant dense<0.000000e+00> : vector<1024xf32>
    %7 = vector.multi_reduction <add>, %6, %cst_4 [0] : vector<8x1024xf32> to vector<1024xf32>
    %8 = vector.shape_cast %7 : vector<1024xf32> to vector<1x1024xf32>
    %cst_5 = arith.constant 1.250000e-01 : f32
    %9 = vector.broadcast %cst_5 : f32 to vector<1x1024xf32>
    %10 = arith.mulf %5, %9 : vector<1x1024xf32>
    %cst_6 = arith.constant 1.250000e-01 : f32
    %11 = vector.broadcast %cst_6 : f32 to vector<1x1024xf32>
    %12 = arith.mulf %8, %11 : vector<1x1024xf32>
    %13 = arith.mulf %10, %10 : vector<1x1024xf32>
    %14 = arith.subf %12, %13 : vector<1x1024xf32>
    %c0_7 = arith.constant 0 : index
    %c0_8 = arith.constant 0 : index
    %15 = vector.load %arg2[%c0_7, %c0_8] : memref<1x1024xf32, #tpu.memory_space<vmem>>, vector<1x1024xf32>
    %cst_9 = arith.constant 9.99999974E-6 : f32
    %16 = vector.broadcast %cst_9 : f32 to vector<1x1024xf32>
    %17 = arith.addf %14, %16 : vector<1x1024xf32>
    %18 = math.rsqrt %17 : vector<1x1024xf32>
    %19 = arith.mulf %15, %18 : vector<1x1024xf32>
    %20 = vector.broadcast %10 : vector<1x1024xf32> to vector<8x1024xf32>
    %21 = arith.subf %3, %20 : vector<8x1024xf32>
    %22 = vector.broadcast %19 : vector<1x1024xf32> to vector<8x1024xf32>
    %23 = arith.mulf %21, %22 : vector<8x1024xf32>
    %c0_10 = arith.constant 0 : index
    %c0_11 = arith.constant 0 : index
    %24 = vector.load %arg3[%c0_10, %c0_11] : memref<1x1024xf32, #tpu.memory_space<vmem>>, vector<1x1024xf32>
    %25 = vector.broadcast %24 : vector<1x1024xf32> to vector<8x1024xf32>
    %26 = arith.addf %23, %25 : vector<8x1024xf32>
    %cst_12 = arith.constant 0.000000e+00 : f32
    %27 = vector.broadcast %cst_12 : f32 to vector<8x1024xf32>
    %28 = arith.maximumf %26, %27 : vector<8x1024xf32>
    tpu.wait_dma2 semaphore(%arg11 : memref<!tpu.dma_semaphore, #tpu.memory_space<semaphore_mem>>) src(%arg4 : memref<1024x256xbf16, #tpu.memory_space<any>>) dst(%arg10 : memref<1024x256xbf16, #tpu.memory_space<vmem>>)
    %29 = arith.truncf %28 : vector<8x1024xf32> to vector<8x1024xbf16>
    %c0_13 = arith.constant 0 : index
    %c0_14 = arith.constant 0 : index
    %30 = vector.load %arg10[%c0_13, %c0_14] : memref<1024x256xbf16, #tpu.memory_space<vmem>>, vector<1024x256xbf16>
    %cst_15 = arith.constant dense<0.000000e+00> : vector<8x256xf32>
    %31 = tpu.matmul %29, %30, %cst_15 {dimension_numbers = #tpu.dot_dimension_numbers<[1], [0], [0], [1], [0, 0, 1, 1], [], []>} : vector<8x1024xbf16>, vector<1024x256xbf16>, vector<8x256xf32> -> vector<8x256xf32>
    %cst_16 = arith.constant dense<0.000000e+00> : vector<256xf32>
    %32 = vector.multi_reduction <add>, %31, %cst_16 [0] : vector<8x256xf32> to vector<256xf32>
    %33 = vector.shape_cast %32 : vector<256xf32> to vector<1x256xf32>
    %34 = arith.mulf %31, %31 : vector<8x256xf32>
    %cst_17 = arith.constant dense<0.000000e+00> : vector<256xf32>
    %35 = vector.multi_reduction <add>, %34, %cst_17 [0] : vector<8x256xf32> to vector<256xf32>
    %36 = vector.shape_cast %35 : vector<256xf32> to vector<1x256xf32>
    %cst_18 = arith.constant 1.250000e-01 : f32
    %37 = vector.broadcast %cst_18 : f32 to vector<1x256xf32>
    %38 = arith.mulf %33, %37 : vector<1x256xf32>
    %cst_19 = arith.constant 1.250000e-01 : f32
    %39 = vector.broadcast %cst_19 : f32 to vector<1x256xf32>
    %40 = arith.mulf %36, %39 : vector<1x256xf32>
    %41 = arith.mulf %38, %38 : vector<1x256xf32>
    %42 = arith.subf %40, %41 : vector<1x256xf32>
    %c0_20 = arith.constant 0 : index
    %c0_21 = arith.constant 0 : index
    %43 = vector.load %arg5[%c0_20, %c0_21] : memref<1x256xf32, #tpu.memory_space<vmem>>, vector<1x256xf32>
    %cst_22 = arith.constant 9.99999974E-6 : f32
    %44 = vector.broadcast %cst_22 : f32 to vector<1x256xf32>
    %45 = arith.addf %42, %44 : vector<1x256xf32>
    %46 = math.rsqrt %45 : vector<1x256xf32>
    %47 = arith.mulf %43, %46 : vector<1x256xf32>
    %48 = vector.broadcast %38 : vector<1x256xf32> to vector<8x256xf32>
    %49 = arith.subf %31, %48 : vector<8x256xf32>
    %50 = vector.broadcast %47 : vector<1x256xf32> to vector<8x256xf32>
    %51 = arith.mulf %49, %50 : vector<8x256xf32>
    %c0_23 = arith.constant 0 : index
    %c0_24 = arith.constant 0 : index
    %52 = vector.load %arg6[%c0_23, %c0_24] : memref<1x256xf32, #tpu.memory_space<vmem>>, vector<1x256xf32>
    %53 = vector.broadcast %52 : vector<1x256xf32> to vector<8x256xf32>
    %54 = arith.addf %51, %53 : vector<8x256xf32>
    %cst_25 = arith.constant 0.000000e+00 : f32
    %55 = vector.broadcast %cst_25 : f32 to vector<8x256xf32>
    %56 = arith.maximumf %54, %55 : vector<8x256xf32>
    %c0_26 = arith.constant 0 : index
    %c0_27 = arith.constant 0 : index
    %57 = vector.load %arg7[%c0_26, %c0_27] : memref<1x256xf32, #tpu.memory_space<vmem>>, vector<1x256xf32>
    %58 = vector.broadcast %57 : vector<1x256xf32> to vector<8x256xf32>
    %59 = arith.mulf %56, %58 : vector<8x256xf32>
    %cst_28 = arith.constant dense<0.000000e+00> : vector<8xf32>
    %60 = vector.multi_reduction <add>, %59, %cst_28 [1] : vector<8x256xf32> to vector<8xf32>
    %61 = vector.shape_cast %60 : vector<8xf32> to vector<8x1xf32>
    %c0_29 = arith.constant 0 : index
    %62 = memref.load %arg8[%c0_29] : memref<1xf32, #tpu.memory_space<smem>>
    %63 = vector.broadcast %62 : f32 to vector<8x1xf32>
    %64 = arith.addf %61, %63 : vector<8x1xf32>
    %c0_30 = arith.constant 0 : index
    %c0_31 = arith.constant 0 : index
    %65 = vector.load %arg9[%c0_30, %c0_31] : memref<8x1xf32, #tpu.memory_space<vmem>>, vector<8x1xf32>
    tpu.vector_store %arg9[%c0_30, %c0_31], %64 {strides = array<i32>} : memref<8x1xf32, #tpu.memory_space<vmem>>, vector<8x1xf32>,
    return
  }
}

</mosaic_0001>

<llo_original>
// kernel: tpu_custom_call.1
$region0: #{tpu_custom_call.1}
  #allocation0 [shape = 'u32[]', space=smem, size = 0x4, offset = 0x4, fixed_abs, tag = 'smem constant byte address 0x4 - core index']
  #allocation1 [shape = 'u32[144,128]{1,0:T(1,128)}', space=vmem, size = 0x12000, scoped, tag = 'internal scratch']
  #allocation2 [shape = 'bf16[1024,256]{1,0:T(16,128)(2,1)}', space=vmem, size = 0x80000, scoped, tag = 'scratch operand']
  #allocation3 [shape = 's32[1]{0}', space=sflag, size = 0x4, scoped, tag = 'scratch operand']
  #allocation4 [shape = 'f32[1]{0:T(128)S(6)}', space=smem, size = 0x200, scoped, tag = 'scoped memory for tpu_custom_call.1']
  #allocation10 [shape = 's32[]', space=sflag, size = 0x4, offset = 0, fixed_abs, tag = 'sflag constant byte address 0x0 - dummy sync flag']
  %s0 = inlined_call_operand.hbm [shape: f32[8,32], index: 0, kind: input, shape index: {}]
  %s1 = inlined_call_operand.hbm [shape: bf16[32,1024], index: 1, kind: input, shape index: {}]
  %s2 = inlined_call_operand.vmem [shape: f32[1,1024], index: 2, kind: input, shape index: {}]
  %s3 = inlined_call_operand.hbm [shape: f32[1,1024], index: 3, kind: input, shape index: {}]
  %s4 = inlined_call_operand.hbm [shape: bf16[1024,256], index: 4, kind: input, shape index: {}]
  %s5 = inlined_call_operand.vmem [shape: f32[1,256], index: 5, kind: input, shape index: {}]
  %s6 = inlined_call_operand.vmem [shape: f32[1,256], index: 6, kind: input, shape index: {}]
  %s7 = inlined_call_operand.vmem [shape: f32[1,256], index: 7, kind: input, shape index: {}]
  %s8 = inlined_call_operand.<no memory space> [shape: f32[1], index: 8, kind: input, shape index: {}]
  %s9 = inlined_call_operand.vmem [shape: f32[8,1], index: 9, kind: output, shape index: {}]
  %s10 = sld [smem:[#allocation0]]
  $region54: #{tpu_custom_call.1} parent=0
    _
  %s12 = ssub.s32 1, %s10
  %s13 = scalar_select 0, %s12, %s10
  %14 = sst [smem:[#allocation4]] %s8
  $region1: #{tpu_custom_call.1} parent=0
    #allocation5 [shape = 'u8[4096]{0}', space=vmem, size = 0x1000, scoped, tag = 'input window, operand 0, single buffered']
    #allocation6 [shape = 's32[1]{0}', space=sflag, size = 0x4, scoped, tag = 'scoped memory for tpu_custom_call.1']
    #allocation7 [shape = 'u8[65536]{0}', space=vmem, size = 0x10000, scoped, tag = 'input window, operand 1, single buffered']
    #allocation8 [shape = 's32[1]{0}', space=sflag, size = 0x4, scoped, tag = 'scoped memory for tpu_custom_call.1']
    #allocation9 [shape = 'u8[4096]{0}', space=vmem, size = 0x1000, scoped, tag = 'input window, operand 3, single buffered']
    #allocation11 [shape = 'u32[9]{0}', space=smem, size = 0x24, scoped, tag = 'DMA stride descriptor']
    %15 = vsyncpa [#allocation6], 0
    %16 = vsyncpa [#allocation8], 0
    // Predicated region
    $region2: #{tpu_custom_call.1} parent=1 // pred_check
      _
    $region3: #{tpu_custom_call.1} parent=1 // pred_check_branch
      %18 = sbr.rel (0) target = $region5
    $region4: #{tpu_custom_call.1} parent=1 // pred_region
      %s20 = ssub.s32 128, 128
      %21 = vsyncadd [#allocation6], %s20
      %s23 = sshll.u32 [#allocation5], 4
      %s24 = int_to_ptr.vmem [resolvable:$true] %s23
      %26 = dma.hbm_to_vmem [thread:$0]  %s0, 128, %s24, [#allocation6]
    $region5: #{tpu_custom_call.1} parent=1 // pred_fallthru
      _
    // Predicated region
    $region6: #{tpu_custom_call.1} parent=1 // pred_check
      _
    $region7: #{tpu_custom_call.1} parent=1 // pred_check_branch
      %28 = sbr.rel (0) target = $region9
    $region8: #{tpu_custom_call.1} parent=1 // pred_region
      %s30 = ssub.s32 2048, 2048
      %31 = vsyncadd [#allocation8], %s30
      %s32 = sshll.u32 [#allocation7], 4
      %s33 = int_to_ptr.vmem [resolvable:$true] %s32
      %38 = dma.hbm_to_vmem [thread:$0]  %s1, 2048, %s33, [#allocation8], 512, 512, 32
    $region9: #{tpu_custom_call.1} parent=1 // pred_fallthru
      _
    // Predicated region
    $region10: #{tpu_custom_call.1} parent=1 // pred_check
      _
    $region11: #{tpu_custom_call.1} parent=1 // pred_check_branch
      %40 = sbr.rel (0) target = $region13
    $region12: #{tpu_custom_call.1} parent=1 // pred_region
      _
    $region13: #{tpu_custom_call.1} parent=1 // pred_fallthru
      _
    // Predicated region
    $region14: #{tpu_custom_call.1} parent=1 // pred_check
      _
    $region15: #{tpu_custom_call.1} parent=1 // pred_check_branch
      %42 = sbr.rel (0) target = $region17
    $region16: #{tpu_custom_call.1} parent=1 // pred_region
      %s44 = ssub.s32 128, 128
      %45 = vsyncadd [#allocation8], %s44
      %s47 = sshll.u32 [#allocation9], 4
      %s48 = int_to_ptr.vmem [resolvable:$true] %s47
      %50 = dma.hbm_to_vmem [thread:$0]  %s3, 128, %s48, [#allocation8]
    $region17: #{tpu_custom_call.1} parent=1 // pred_fallthru
      _
    // Predicated region
    $region18: #{tpu_custom_call.1} parent=1 // pred_check
      _
    $region19: #{tpu_custom_call.1} parent=1 // pred_check_branch
      %52 = sbr.rel (0) target = $region21
    $region20: #{tpu_custom_call.1} parent=1 // pred_region
      _
    $region21: #{tpu_custom_call.1} parent=1 // pred_fallthru
      _
    // Predicated region
    $region22: #{tpu_custom_call.1} parent=1 // pred_check
      _
    $region23: #{tpu_custom_call.1} parent=1 // pred_check_branch
      %54 = sbr.rel (0) target = $region25
    $region24: #{tpu_custom_call.1} parent=1 // pred_region
      _
    $region25: #{tpu_custom_call.1} parent=1 // pred_fallthru
      _
    // Predicated region
    $region26: #{tpu_custom_call.1} parent=1 // pred_check
      _
    $region27: #{tpu_custom_call.1} parent=1 // pred_check_branch
      %56 = sbr.rel (0) target = $region29
    $region28: #{tpu_custom_call.1} parent=1 // pred_region
      _
    $region29: #{tpu_custom_call.1} parent=1 // pred_fallthru
      _
    // Predicated region
    $region30: #{tpu_custom_call.1} parent=1 // pred_check
      _
    $region31: #{tpu_custom_call.1} parent=1 // pred_check_branch
      %58 = sbr.rel (0) target = $region33
    $region32: #{tpu_custom_call.1} parent=1 // pred_region
      _
    $region33: #{tpu_custom_call.1} parent=1 // pred_fallthru
      _
    // Predicated region
    $region34: #{tpu_custom_call.1} parent=1 // pred_check
      _
    $region35: #{tpu_custom_call.1} parent=1 // pred_check_branch
      %60 = sbr.rel (0) target = $region37
    $region36: #{tpu_custom_call.1} parent=1 // pred_region
      %61 = dma.done [#allocation6], 128
    $region37: #{tpu_custom_call.1} parent=1 // pred_fallthru
      _
    // Predicated region
    $region38: #{tpu_custom_call.1} parent=1 // pred_check
      _
    $region39: #{tpu_custom_call.1} parent=1 // pred_check_branch
      %63 = sbr.rel (0) target = $region41
    $region40: #{tpu_custom_call.1} parent=1 // pred_region
      %64 = dma.done [#allocation8], 2048
    $region41: #{tpu_custom_call.1} parent=1 // pred_fallthru
      _
    // Predicated region
    $region42: #{tpu_custom_call.1} parent=1 // pred_check
      _
    $region43: #{tpu_custom_call.1} parent=1 // pred_check_branch
      %66 = sbr.rel (0) target = $region45
    $region44: #{tpu_custom_call.1} parent=1 // pred_region
      %67 = dma.done [#allocation8], 128
    $region45: #{tpu_custom_call.1} parent=1 // pred_fallthru
      _
    %s70 = sshll.u32 1, 14
    %s71 = sxor.u32 4294967295, %s70
    %s73 = sld [smem:[#allocation0]]
    %s74 = sadd.s32 2, %s73
    %s76 = sshll.u32 7, 26
    %s77 = sxor.u32 4294967295, %s76
    %s78 = sand.u32 0, %s77
    %s79 = sshll.u32 %s74, 26
    %s80 = sor.u32 %s78, %s79
    %s81 = sshll.u32 [#allocation2], 4
    %s82 = int_to_ptr.vmem [resolvable:$true] %s81
    %85 = sst [smem:[#allocation11]] 256
    %s86 = scalar_lea.smem [#allocation11], 1
    %87 = sst [smem:[%s86]] 256
    %s88 = scalar_lea.smem [#allocation11], 2
    %89 = sst [smem:[%s88]] 2
    %s90 = scalar_lea.smem [#allocation11], 3
    %91 = sst [smem:[%s90]] 64
    %s92 = scalar_lea.smem [#allocation11], 4
    %93 = sst [smem:[%s92]] 128
    %s94 = scalar_lea.smem [#allocation11], 5
    %95 = sst [smem:[%s94]] 2
    %s96 = scalar_lea.smem [#allocation11], 6
    %97 = sst [smem:[%s96]] 128
    %s98 = scalar_lea.smem [#allocation11], 7
    %99 = sst [smem:[%s98]] 64
    %s100 = scalar_lea.smem [#allocation11], 8
    %101 = sst [smem:[%s100]] 4
    %103 = dma.general %s4, 16384, %s82, [#allocation3], [#allocation10], [#allocation11], %s80, 0
    %v104 = vld [vmem:[#allocation5] sm:$0xff]
    %v105 = vpack.c.bf16 %v104, %v104
    %v106 = vld [vmem:[#allocation7] sm:$0xff]
    %v107 = vld [vmem:[#allocation7 + $0x8] sm:$0xff]
    %v108 = vld [vmem:[#allocation7 + $0x10] sm:$0xff]
    %v109 = vld [vmem:[#allocation7 + $0x18] sm:$0xff]
    %v110 = vld [vmem:[#allocation7 + $0x20] sm:$0xff]
    %v111 = vld [vmem:[#allocation7 + $0x28] sm:$0xff]
    %v112 = vld [vmem:[#allocation7 + $0x30] sm:$0xff]
    %v113 = vld [vmem:[#allocation7 + $0x38] sm:$0xff]
    %v114 = vld [vmem:[#allocation7 + $0x40] sm:$0xff]
    %v115 = vld [vmem:[#allocation7 + $0x48] sm:$0xff]
    %v116 = vld [vmem:[#allocation7 + $0x50] sm:$0xff]
    %v117 = vld [vmem:[#allocation7 + $0x58] sm:$0xff]
    %v118 = vld [vmem:[#allocation7 + $0x60] sm:$0xff]
    %v119 = vld [vmem:[#allocation7 + $0x68] sm:$0xff]
    %v120 = vld [vmem:[#allocation7 + $0x70] sm:$0xff]
    %v121 = vld [vmem:[#allocation7 + $0x78] sm:$0xff]
    %v138 = vunpack.c.l.b16 %v106
    %v139 = vunpack.c.h.b16 %v106
    %v140 = vunpack.c.l.b16 %v107
    %v141 = vunpack.c.h.b16 %v107
    %v142 = vunpack.c.l.b16 %v108
    %v143 = vunpack.c.h.b16 %v108
    %v144 = vunpack.c.l.b16 %v109
    %v145 = vunpack.c.h.b16 %v109
    %v146 = vunpack.c.l.b16 %v110
    %v147 = vunpack.c.h.b16 %v110
    %v148 = vunpack.c.l.b16 %v111
    %v149 = vunpack.c.h.b16 %v111
    %v150 = vunpack.c.l.b16 %v112
    %v151 = vunpack.c.h.b16 %v112
    %v152 = vunpack.c.l.b16 %v113
    %v153 = vunpack.c.h.b16 %v113
    %v154 = vunpack.c.l.b16 %v114
    %v155 = vunpack.c.h.b16 %v114
    %v156 = vunpack.c.l.b16 %v115
    %v157 = vunpack.c.h.b16 %v115
    %v158 = vunpack.c.l.b16 %v116
    %v159 = vunpack.c.h.b16 %v116
    %v160 = vunpack.c.l.b16 %v117
    %v161 = vunpack.c.h.b16 %v117
    %v162 = vunpack.c.l.b16 %v118
    %v163 = vunpack.c.h.b16 %v118
    %v164 = vunpack.c.l.b16 %v119
    %v165 = vunpack.c.h.b16 %v119
    %v166 = vunpack.c.l.b16 %v120
    %v167 = vunpack.c.h.b16 %v120
    %v168 = vunpack.c.l.b16 %v121
    %v169 = vunpack.c.h.b16 %v121
    %v170 = vpack.c.b16 %v146, %v138
    %v171 = vpack.c.b16 %v147, %v139
    %v172 = vpack.c.b16 %v148, %v140
    %v173 = vpack.c.b16 %v149, %v141
    %v174 = vpack.c.b16 %v150, %v142
    %v175 = vpack.c.b16 %v151, %v143
    %v176 = vpack.c.b16 %v152, %v144
    %v177 = vpack.c.b16 %v153, %v145
    %v178 = vpack.c.b16 %v162, %v154
    %v179 = vpack.c.b16 %v163, %v155
    %v180 = vpack.c.b16 %v164, %v156
    %v181 = vpack.c.b16 %v165, %v157
    %v182 = vpack.c.b16 %v166, %v158
    %v183 = vpack.c.b16 %v167, %v159
    %v184 = vpack.c.b16 %v168, %v160
    %v185 = vpack.c.b16 %v169, %v161
    %vm202 = vcmask 261120
    %v204 = vsel %vm202, %v105, 0
    %206 = vmatprep.subr.bf16.mxu0 %v171
    %207 = vmatpush1.bf16.msra.mxu0 %v170
    %208 = vmatprep.subr.bf16.mxu0 %v179
    %209 = vmatpush1.bf16.msra.mxu0 %v178
    %210 = vmatprep.subr.bf16.mxu0 0
    %211 = vmatpush1.bf16.msra.mxu0 0
    %212 = vmatprep.subr.bf16.mxu0 0
    %213 = vmatpush1.bf16.msra.mxu0 0
    %214 = vmatprep.subr.bf16.mxu0 0
    %215 = vmatpush1.bf16.msra.mxu0 0
    %216 = vmatprep.subr.bf16.mxu0 0
    %217 = vmatpush1.bf16.msra.mxu0 0
    %218 = vmatprep.subr.bf16.mxu0 0
    %219 = vmatpush1.bf16.msra.mxu0 0
    %220 = vmatprep.subr.bf16.mxu0 0
    %221 = vmatpush1.bf16.msra.mxu0 0
    %222 = vmatprep.subr.bf16.mxu0 0
    %223 = vmatpush1.bf16.msra.mxu0 0
    %224 = vmatprep.subr.bf16.mxu0 0
    %225 = vmatpush1.bf16.msra.mxu0 0
    %226 = vmatprep.subr.bf16.mxu0 0
    %227 = vmatpush1.bf16.msra.mxu0 0
    %228 = vmatprep.subr.bf16.mxu0 0
    %229 = vmatpush1.bf16.msra.mxu0 0
    %230 = vmatprep.subr.bf16.mxu0 0
    %231 = vmatpush1.bf16.msra.mxu0 0
    %232 = vmatprep.subr.bf16.mxu0 0
    %233 = vmatpush1.bf16.msra.mxu0 0
    %234 = vmatprep.subr.bf16.mxu0 0
    %235 = vmatpush1.bf16.msra.mxu0 0
    %236 = vmatprep.subr.bf16.mxu0 0
    %237 = vmatpush1.bf16.msra.mxu0 0
    %238 = vmatprep.mubr.bf16.mxu0 0
    %239 = vmatmul.mubr.bf16.gmra.mrb[0].mxu0 %v204
    %v240 = vpop.f32.mrb[0].mxu0
    %v241 = vadd.f32 0.0, %v240
    %v242 = vpop.f32.mrb[0].mxu0
    %v243 = vadd.f32 0.0, %v242
    %v244 = vpop.f32.mrb[0].mxu0
    %v245 = vpop.f32.mrb[0].mxu0
    %246 = vdwg.mxu0
    %247 = vmatprep.subr.bf16.mxu0 %v173
    %248 = vmatpush1.bf16.msra.mxu0 %v172
    %249 = vmatprep.subr.bf16.mxu0 %v181
    %250 = vmatpush1.bf16.msra.mxu0 %v180
    %251 = vmatprep.subr.bf16.mxu0 0
    %252 = vmatpush1.bf16.msra.mxu0 0
    %253 = vmatprep.subr.bf16.mxu0 0
    %254 = vmatpush1.bf16.msra.mxu0 0
    %255 = vmatprep.subr.bf16.mxu0 0
    %256 = vmatpush1.bf16.msra.mxu0 0
    %257 = vmatprep.subr.bf16.mxu0 0
    %258 = vmatpush1.bf16.msra.mxu0 0
    %259 = vmatprep.subr.bf16.mxu0 0
    %260 = vmatpush1.bf16.msra.mxu0 0
    %261 = vmatprep.subr.bf16.mxu0 0
    %262 = vmatpush1.bf16.msra.mxu0 0
    %263 = vmatprep.subr.bf16.mxu0 0
    %264 = vmatpush1.bf16.msra.mxu0 0
    %265 = vmatprep.subr.bf16.mxu0 0
    %266 = vmatpush1.bf16.msra.mxu0 0
    %267 = vmatprep.subr.bf16.mxu0 0
    %268 = vmatpush1.bf16.msra.mxu0 0
    %269 = vmatprep.subr.bf16.mxu0 0
    %270 = vmatpush1.bf16.msra.mxu0 0
    %271 = vmatprep.subr.bf16.mxu0 0
    %272 = vmatpush1.bf16.msra.mxu0 0
    %273 = vmatprep.subr.bf16.mxu0 0
    %274 = vmatpush1.bf16.msra.mxu0 0
    %275 = vmatprep.subr.bf16.mxu0 0
    %276 = vmatpush1.bf16.msra.mxu0 0
    %277 = vmatprep.subr.bf16.mxu0 0
    %278 = vmatpush1.bf16.msra.mxu0 0
    %279 = vmatprep.mubr.bf16.mxu0 0
    %280 = vmatmul.mubr.bf16.gmra.mrb[0].mxu0 %v204
    %v281 = vpop.f32.mrb[0].mxu0
    %v282 = vadd.f32 0.0, %v281
    %v283 = vpop.f32.mrb[0].mxu0
    %v284 = vadd.f32 0.0, %v283
    %v285 = vpop.f32.mrb[0].mxu0
    %v286 = vpop.f32.mrb[0].mxu0
    %287 = vdwg.mxu0
    %288 = vmatprep.subr.bf16.mxu0 %v175
    %289 = vmatpush1.bf16.msra.mxu0 %v174
    %290 = vmatprep.subr.bf16.mxu0 %v183
    %291 = vmatpush1.bf16.msra.mxu0 %v182
    %292 = vmatprep.subr.bf16.mxu0 0
    %293 = vmatpush1.bf16.msra.mxu0 0
    %294 = vmatprep.subr.bf16.mxu0 0
    %295 = vmatpush1.bf16.msra.mxu0 0
    %296 = vmatprep.subr.bf16.mxu0 0
    %297 = vmatpush1.bf16.msra.mxu0 0
    %298 = vmatprep.subr.bf16.mxu0 0
    %299 = vmatpush1.bf16.msra.mxu0 0
    %300 = vmatprep.subr.bf16.mxu0 0
    %301 = vmatpush1.bf16.msra.mxu0 0
    %302 = vmatprep.subr.bf16.mxu0 0
    %303 = vmatpush1.bf16.msra.mxu0 0
    %304 = vmatprep.subr.bf16.mxu0 0
    %305 = vmatpush1.bf16.msra.mxu0 0
    %306 = vmatprep.subr.bf16.mxu0 0
    %307 = vmatpush1.bf16.msra.mxu0 0
    %308 = vmatprep.subr.bf16.mxu0 0
    %309 = vmatpush1.bf16.msra.mxu0 0
    %310 = vmatprep.subr.bf16.mxu0 0
    %311 = vmatpush1.bf16.msra.mxu0 0
    %312 = vmatprep.subr.bf16.mxu0 0
    %313 = vmatpush1.bf16.msra.mxu0 0
    %314 = vmatprep.subr.bf16.mxu0 0
    %315 = vmatpush1.bf16.msra.mxu0 0
    %316 = vmatprep.subr.bf16.mxu0 0
    %317 = vmatpush1.bf16.msra.mxu0 0
    %318 = vmatprep.subr.bf16.mxu0 0
    %319 = vmatpush1.bf16.msra.mxu0 0
    %320 = vmatprep.mubr.bf16.mxu0 0
    %321 = vmatmul.mubr.bf16.gmra.mrb[0].mxu0 %v204
    %v322 = vpop.f32.mrb[0].mxu0
    %v323 = vadd.f32 0.0, %v322
    %v324 = vpop.f32.mrb[0].mxu0
    %v325 = vadd.f32 0.0, %v324
    %v326 = vpop.f32.mrb[0].mxu0
    %v327 = vpop.f32.mrb[0].mxu0
    %328 = vdwg.mxu0
    %329 = vmatprep.subr.bf16.mxu0 %v177
    %330 = vmatpush1.bf16.msra.mxu0 %v176
    %331 = vmatprep.subr.bf16.mxu0 %v185
    %332 = vmatpush1.bf16.msra.mxu0 %v184
    %333 = vmatprep.subr.bf16.mxu0 0
    %334 = vmatpush1.bf16.msra.mxu0 0
    %335 = vmatprep.subr.bf16.mxu0 0
    %336 = vmatpush1.bf16.msra.mxu0 0
    %337 = vmatprep.subr.bf16.mxu0 0
    %338 = vmatpush1.bf16.msra.mxu0 0
    %339 = vmatprep.subr.bf16.mxu0 0
    %340 = vmatpush1.bf16.msra.mxu0 0
    %341 = vmatprep.subr.bf16.mxu0 0
    %342 = vmatpush1.bf16.msra.mxu0 0
    %343 = vmatprep.subr.bf16.mxu0 0
    %344 = vmatpush1.bf16.msra.mxu0 0
    %345 = vmatprep.subr.bf16.mxu0 0
    %346 = vmatpush1.bf16.msra.mxu0 0
    %347 = vmatprep.subr.bf16.mxu0 0
    %348 = vmatpush1.bf16.msra.mxu0 0
    %349 = vmatprep.subr.bf16.mxu0 0
    %350 = vmatpush1.bf16.msra.mxu0 0
    %351 = vmatprep.subr.bf16.mxu0 0
    %352 = vmatpush1.bf16.msra.mxu0 0
    %353 = vmatprep.subr.bf16.mxu0 0
    %354 = vmatpush1.bf16.msra.mxu0 0
    %355 = vmatprep.subr.bf16.mxu0 0
    %356 = vmatpush1.bf16.msra.mxu0 0
    %357 = vmatprep.subr.bf16.mxu0 0
    %358 = vmatpush1.bf16.msra.mxu0 0
    %359 = vmatprep.subr.bf16.mxu0 0
    %360 = vmatpush1.bf16.msra.mxu0 0
    %361 = vmatprep.mubr.bf16.mxu0 0
    %362 = vmatmul.mubr.bf16.gmra.mrb[0].mxu0 %v204
    %v363 = vpop.f32.mrb[0].mxu0
    %v364 = vadd.f32 0.0, %v363
    %v365 = vpop.f32.mrb[0].mxu0
    %v366 = vadd.f32 0.0, %v365
    %v367 = vpop.f32.mrb[0].mxu0
    %v368 = vpop.f32.mrb[0].mxu0
    %369 = vdwg.mxu0
    %v370 = vrot.slane %v241, 4
    %v371 = vadd.f32 %v241, %v370
    %v372 = vrot.slane %v371, 2
    %v373 = vadd.f32 %v371, %v372
    %v374 = vrot.slane %v373, 1
    %v375 = vadd.f32 %v373, %v374
    %v376 = vrot.slane %v243, 4
    %v377 = vadd.f32 %v243, %v376
    %v378 = vrot.slane %v377, 2
    %v379 = vadd.f32 %v377, %v378
    %v380 = vrot.slane %v379, 1
    %v381 = vadd.f32 %v379, %v380
    %v382 = vrot.slane %v282, 4
    %v383 = vadd.f32 %v282, %v382
    %v384 = vrot.slane %v383, 2
    %v385 = vadd.f32 %v383, %v384
    %v386 = vrot.slane %v385, 1
    %v387 = vadd.f32 %v385, %v386
    %v388 = vrot.slane %v284, 4
    %v389 = vadd.f32 %v284, %v388
    %v390 = vrot.slane %v389, 2
    %v391 = vadd.f32 %v389, %v390
    %v392 = vrot.slane %v391, 1
    %v393 = vadd.f32 %v391, %v392
    %v394 = vrot.slane %v323, 4
    %v395 = vadd.f32 %v323, %v394
    %v396 = vrot.slane %v395, 2
    %v397 = vadd.f32 %v395, %v396
    %v398 = vrot.slane %v397, 1
    %v399 = vadd.f32 %v397, %v398
    %v400 = vrot.slane %v325, 4
    %v401 = vadd.f32 %v325, %v400
    %v402 = vrot.slane %v401, 2
    %v403 = vadd.f32 %v401, %v402
    %v404 = vrot.slane %v403, 1
    %v405 = vadd.f32 %v403, %v404
    %v406 = vrot.slane %v364, 4
    %v407 = vadd.f32 %v364, %v406
    %v408 = vrot.slane %v407, 2
    %v409 = vadd.f32 %v407, %v408
    %v410 = vrot.slane %v409, 1
    %v411 = vadd.f32 %v409, %v410
    %v412 = vrot.slane %v366, 4
    %v413 = vadd.f32 %v366, %v412
    %v414 = vrot.slane %v413, 2
    %v415 = vadd.f32 %v413, %v414
    %v416 = vrot.slane %v415, 1
    %v417 = vadd.f32 %v415, %v416
    %v418 = vmul.f32 %v241, %v241
    %v419 = vmul.f32 %v243, %v243
    %v420 = vmul.f32 %v282, %v282
    %v421 = vmul.f32 %v284, %v284
    %v422 = vmul.f32 %v323, %v323
    %v423 = vmul.f32 %v325, %v325
    %v424 = vmul.f32 %v364, %v364
    %v425 = vmul.f32 %v366, %v366
    %v426 = vrot.slane %v418, 4
    %v427 = vadd.f32 %v418, %v426
    %v428 = vrot.slane %v427, 2
    %v429 = vadd.f32 %v427, %v428
    %v430 = vrot.slane %v429, 1
    %v431 = vadd.f32 %v429, %v430
    %v432 = vrot.slane %v419, 4
    %v433 = vadd.f32 %v419, %v432
    %v434 = vrot.slane %v433, 2
    %v435 = vadd.f32 %v433, %v434
    %v436 = vrot.slane %v435, 1
    %v437 = vadd.f32 %v435, %v436
    %v438 = vrot.slane %v420, 4
    %v439 = vadd.f32 %v420, %v438
    %v440 = vrot.slane %v439, 2
    %v441 = vadd.f32 %v439, %v440
    %v442 = vrot.slane %v441, 1
    %v443 = vadd.f32 %v441, %v442
    %v444 = vrot.slane %v421, 4
    %v445 = vadd.f32 %v421, %v444
    %v446 = vrot.slane %v445, 2
    %v447 = vadd.f32 %v445, %v446
    %v448 = vrot.slane %v447, 1
    %v449 = vadd.f32 %v447, %v448
    %v450 = vrot.slane %v422, 4
    %v451 = vadd.f32 %v422, %v450
    %v452 = vrot.slane %v451, 2
    %v453 = vadd.f32 %v451, %v452
    %v454 = vrot.slane %v453, 1
    %v455 = vadd.f32 %v453, %v454
    %v456 = vrot.slane %v423, 4
    %v457 = vadd.f32 %v423, %v456
    %v458 = vrot.slane %v457, 2
    %v459 = vadd.f32 %v457, %v458
    %v460 = vrot.slane %v459, 1
    %v461 = vadd.f32 %v459, %v460
    %v462 = vrot.slane %v424, 4
    %v463 = vadd.f32 %v424, %v462
    %v464 = vrot.slane %v463, 2
    %v465 = vadd.f32 %v463, %v464
    %v466 = vrot.slane %v465, 1
    %v467 = vadd.f32 %v465, %v466
    %v468 = vrot.slane %v425, 4
    %v469 = vadd.f32 %v425, %v468
    %v470 = vrot.slane %v469, 2
    %v471 = vadd.f32 %v469, %v470
    %v472 = vrot.slane %v471, 1
    %v473 = vadd.f32 %v471, %v472
    %v474 = vmul.f32 %v375, 0.125
    %v475 = vmul.f32 %v381, 0.125
    %v476 = vmul.f32 %v387, 0.125
    %v477 = vmul.f32 %v393, 0.125
    %v478 = vmul.f32 %v399, 0.125
    %v479 = vmul.f32 %v405, 0.125
    %v480 = vmul.f32 %v411, 0.125
    %v481 = vmul.f32 %v417, 0.125
    %v482 = vmul.f32 %v431, 0.125
    %v483 = vmul.f32 %v437, 0.125
    %v484 = vmul.f32 %v443, 0.125
    %v485 = vmul.f32 %v449, 0.125
    %v486 = vmul.f32 %v455, 0.125
    %v487 = vmul.f32 %v461, 0.125
    %v488 = vmul.f32 %v467, 0.125
    %v489 = vmul.f32 %v473, 0.125
    %v490 = vmul.f32 %v474, %v474
    %v491 = vmul.f32 %v475, %v475
    %v492 = vmul.f32 %v476, %v476
    %v493 = vmul.f32 %v477, %v477
    %v494 = vmul.f32 %v478, %v478
    %v495 = vmul.f32 %v479, %v479
    %v496 = vmul.f32 %v480, %v480
    %v497 = vmul.f32 %v481, %v481
    %v498 = vsub.f32 %v482, %v490
    %v499 = vsub.f32 %v483, %v491
    %v500 = vsub.f32 %v484, %v492
    %v501 = vsub.f32 %v485, %v493
    %v502 = vsub.f32 %v486, %v494
    %v503 = vsub.f32 %v487, %v495
    %v504 = vsub.f32 %v488, %v496
    %v505 = vsub.f32 %v489, %v497
    %v506 = vld [vmem:[%s2] sm:$0xff]
    %v507 = vadd.f32 %v498, 1e-05
    %v508 = vadd.f32 %v499, 1e-05
    %v509 = vadd.f32 %v500, 1e-05
    %v510 = vadd.f32 %v501, 1e-05
    %v511 = vadd.f32 %v502, 1e-05
    %v512 = vadd.f32 %v503, 1e-05
    %v513 = vadd.f32 %v504, 1e-05
    %v514 = vadd.f32 %v505, 1e-05
    %v515 = vrsqrt.pop %v507
    %v516 = vrsqrt.pop %v508
    %v517 = vrsqrt.pop %v509
    %v518 = vrsqrt.pop %v510
    %v519 = vrsqrt.pop %v511
    %v520 = vrsqrt.pop %v512
    %v521 = vrsqrt.pop %v513
    %v522 = vrsqrt.pop %v514
    %v531 = vcombine.low %v515, %v516
    %v532 = vcombine.low %v517, %v518
    %v533 = vcombine.low %v519, %v520
    %v534 = vcombine.low %v521, %v522
    %v536 = vunpack.c.l.s4 1966171168
    %v537 = vunpack.c.0.s8 %v536
    %v538 = vlaneseq
    %v539 = vshrl.u32 %v538, 7
    %v540 = vsub.s32 %v537, %v539
    %v541 = vrot.slane %v531, %v540
    %v543 = vunpack.c.l.s4 1966171168
    %v544 = vunpack.c.0.s8 %v543
    %v545 = vlaneseq
    %v546 = vshrl.u32 %v545, 7
    %v547 = vsub.s32 %v544, %v546
    %v548 = vrot.slane %v532, %v547
    %v550 = vunpack.c.l.s4 1966171168
    %v551 = vunpack.c.0.s8 %v550
    %v552 = vlaneseq
    %v553 = vshrl.u32 %v552, 7
    %v554 = vsub.s32 %v551, %v553
    %v555 = vrot.slane %v533, %v554
    %v557 = vunpack.c.l.s4 1966171168
    %v558 = vunpack.c.0.s8 %v557
    %v559 = vlaneseq
    %v560 = vshrl.u32 %v559, 7
    %v561 = vsub.s32 %v558, %v560
    %v562 = vrot.slane %v534, %v561
    %v563 = vcombine.low %v541, %v548
    %v564 = vcombine.low %v555, %v562
    %v566 = vunpack.c.l.s4 1966171168
    %v567 = vunpack.c.0.s8 %v566
    %v568 = vlaneseq
    %v569 = vshrl.u32 %v568, 7
    %v570 = vsub.s32 %v567, %v569
    %v571 = vrot.slane %v563, %v570
    %v573 = vunpack.c.l.s4 1966171168
    %v574 = vunpack.c.0.s8 %v573
    %v575 = vlaneseq
    %v576 = vshrl.u32 %v575, 7
    %v577 = vsub.s32 %v574, %v576
    %v578 = vrot.slane %v564, %v577
    %v579 = vcombine.low %v571, %v578
    %v581 = vmul.f32 %v506, %v579
    %v582 = vsub.f32 %v241, %v474
    %v583 = vsub.f32 %v243, %v475
    %v584 = vsub.f32 %v282, %v476
    %v585 = vsub.f32 %v284, %v477
    %v586 = vsub.f32 %v323, %v478
    %v587 = vsub.f32 %v325, %v479
    %v588 = vsub.f32 %v364, %v480
    %v589 = vsub.f32 %v366, %v481
    %v591 = vlaneseq
    %v592 = vshrl.u32 %v591, 7
    %v593 = vsub.s32 0, %v592
    %v594 = vrot.slane %v581, %v593
    %v595 = vlaneseq
    %v596 = vshrl.u32 %v595, 7
    %v597 = vsub.s32 1, %v596
    %v598 = vrot.slane %v581, %v597
    %v599 = vlaneseq
    %v600 = vshrl.u32 %v599, 7
    %v601 = vsub.s32 2, %v600
    %v602 = vrot.slane %v581, %v601
    %v603 = vlaneseq
    %v604 = vshrl.u32 %v603, 7
    %v605 = vsub.s32 3, %v604
    %v606 = vrot.slane %v581, %v605
    %v607 = vlaneseq
    %v608 = vshrl.u32 %v607, 7
    %v609 = vsub.s32 4, %v608
    %v610 = vrot.slane %v581, %v609
    %v611 = vlaneseq
    %v612 = vshrl.u32 %v611, 7
    %v613 = vsub.s32 5, %v612
    %v614 = vrot.slane %v581, %v613
    %v615 = vlaneseq
    %v616 = vshrl.u32 %v615, 7
    %v617 = vsub.s32 6, %v616
    %v618 = vrot.slane %v581, %v617
    %v619 = vlaneseq
    %v620 = vshrl.u32 %v619, 7
    %v621 = vsub.s32 7, %v620
    %v622 = vrot.slane %v581, %v621
    %v631 = vmul.f32 %v582, %v594
    %v632 = vmul.f32 %v583, %v598
    %v633 = vmul.f32 %v584, %v602
    %v634 = vmul.f32 %v585, %v606
    %v635 = vmul.f32 %v586, %v610
    %v636 = vmul.f32 %v587, %v614
    %v637 = vmul.f32 %v588, %v618
    %v638 = vmul.f32 %v589, %v622
    %v639 = vld [vmem:[#allocation9] sm:$0xff]
    %v641 = vlaneseq
    %v642 = vshrl.u32 %v641, 7
    %v643 = vsub.s32 0, %v642
    %v644 = vrot.slane %v639, %v643
    %v645 = vlaneseq
    %v646 = vshrl.u32 %v645, 7
    %v647 = vsub.s32 1, %v646
    %v648 = vrot.slane %v639, %v647
    %v649 = vlaneseq
    %v650 = vshrl.u32 %v649, 7
    %v651 = vsub.s32 2, %v650
    %v652 = vrot.slane %v639, %v651
    %v653 = vlaneseq
    %v654 = vshrl.u32 %v653, 7
    %v655 = vsub.s32 3, %v654
    %v656 = vrot.slane %v639, %v655
    %v657 = vlaneseq
    %v658 = vshrl.u32 %v657, 7
    %v659 = vsub.s32 4, %v658
    %v660 = vrot.slane %v639, %v659
    %v661 = vlaneseq
    %v662 = vshrl.u32 %v661, 7
    %v663 = vsub.s32 5, %v662
    %v664 = vrot.slane %v639, %v663
    %v665 = vlaneseq
    %v666 = vshrl.u32 %v665, 7
    %v667 = vsub.s32 6, %v666
    %v668 = vrot.slane %v639, %v667
    %v669 = vlaneseq
    %v670 = vshrl.u32 %v669, 7
    %v671 = vsub.s32 7, %v670
    %v672 = vrot.slane %v639, %v671
    %v681 = vadd.f32 %v631, %v644
    %v682 = vadd.f32 %v632, %v648
    %v683 = vadd.f32 %v633, %v652
    %v684 = vadd.f32 %v634, %v656
    %v685 = vadd.f32 %v635, %v660
    %v686 = vadd.f32 %v636, %v664
    %v687 = vadd.f32 %v637, %v668
    %v688 = vadd.f32 %v638, %v672
    %v689 = vmax.f32 %v681, 0.0
    %v690 = vmax.f32 %v682, 0.0
    %v691 = vmax.f32 %v683, 0.0
    %v692 = vmax.f32 %v684, 0.0
    %v693 = vmax.f32 %v685, 0.0
    %v694 = vmax.f32 %v686, 0.0
    %v695 = vmax.f32 %v687, 0.0
    %v696 = vmax.f32 %v688, 0.0
    %s697 = smul.u32 4, 128
    %s698 = smul.u32 %s697, 2
    %s699 = sshll.u32 %s698, 4
    %700 = dma.done [#allocation3], %s699
    %v701 = vpack.c.bf16 %v689, %v689
    %v702 = vpack.c.bf16 %v690, %v690
    %v703 = vpack.c.bf16 %v691, %v691
    %v704 = vpack.c.bf16 %v692, %v692
    %v705 = vpack.c.bf16 %v693, %v693
    %v706 = vpack.c.bf16 %v694, %v694
    %v707 = vpack.c.bf16 %v695, %v695
    %v708 = vpack.c.bf16 %v696, %v696
    %v709 = vld [vmem:[#allocation2] sm:$0xff]
    %v710 = vld [vmem:[#allocation2 + $0x8] sm:$0xff]
    %v711 = vld [vmem:[#allocation2 + $0x10] sm:$0xff]
    %v712 = vld [vmem:[#allocation2 + $0x18] sm:$0xff]
    %v713 = vld [vmem:[#allocation2 + $0x20] sm:$0xff]
    %v714 = vld [vmem:[#allocation2 + $0x28] sm:$0xff]
    %v715 = vld [vmem:[#allocation2 + $0x30] sm:$0xff]
    %v716 = vld [vmem:[#allocation2 + $0x38] sm:$0xff]
    %v717 = vld [vmem:[#allocation2 + $0x40] sm:$0xff]
    %v718 = vld [vmem:[#allocation2 + $0x48] sm:$0xff]
    %v719 = vld [vmem:[#allocation2 + $0x50] sm:$0xff]
    %v720 = vld [vmem:[#allocation2 + $0x58] sm:$0xff]
    %v721 = vld [vmem:[#allocation2 + $0x60] sm:$0xff]
    %v722 = vld [vmem:[#allocation2 + $0x68] sm:$0xff]
    %v723 = vld [vmem:[#allocation2 + $0x70] sm:$0xff]
    %v724 = vld [vmem:[#allocation2 + $0x78] sm:$0xff]
    %v725 = vld [vmem:[#allocation2 + $0x80] sm:$0xff]
    %v726 = vld [vmem:[#allocation2 + $0x88] sm:$0xff]
    %v727 = vld [vmem:[#allocation2 + $0x90] sm:$0xff]
    %v728 = vld [vmem:[#allocation2 + $0x98] sm:$0xff]
    %v729 = vld [vmem:[#allocation2 + $0xa0] sm:$0xff]
    %v730 = vld [vmem:[#allocation2 + $0xa8] sm:$0xff]
    %v731 = vld [vmem:[#allocation2 + $0xb0] sm:$0xff]
    %v732 = vld [vmem:[#allocation2 + $0xb8] sm:$0xff]
    %v733 = vld [vmem:[#allocation2 + $0xc0] sm:$0xff]
    %v734 = vld [vmem:[#allocation2 + $0xc8] sm:$0xff]
    %v735 = vld [vmem:[#allocation2 + $0xd0] sm:$0xff]
    %v736 = vld [vmem:[#allocation2 + $0xd8] sm:$0xff]
    %v737 = vld [vmem:[#allocation2 + $0xe0] sm:$0xff]
    %v738 = vld [vmem:[#allocation2 + $0xe8] sm:$0xff]
    %v739 = vld [vmem:[#allocation2 + $0xf0] sm:$0xff]
    %v740 = vld [vmem:[#allocation2 + $0xf8] sm:$0xff]
    %v741 = vld [vmem:[#allocation2 + $0x100] sm:$0xff]
    %v742 = vld [vmem:[#allocation2 + $0x108] sm:$0xff]
    %v743 = vld [vmem:[#allocation2 + $0x110] sm:$0xff]
    %v744 = vld [vmem:[#allocation2 + $0x118] sm:$0xff]
    %v745 = vld [vmem:[#allocation2 + $0x120] sm:$0xff]
    %v746 = vld [vmem:[#allocation2 + $0x128] sm:$0xff]
    %v747 = vld [vmem:[#allocation2 + $0x130] sm:$0xff]
    %v748 = vld [vmem:[#allocation2 + $0x138] sm:$0xff]
    %v749 = vld [vmem:[#allocation2 + $0x140] sm:$0xff]
    %v750 = vld [vmem:[#allocation2 + $0x148] sm:$0xff]
    %v751 = vld [vmem:[#allocation2 + $0x150] sm:$0xff]
    %v752 = vld [vmem:[#allocation2 + $0x158] sm:$0xff]
    %v753 = vld [vmem:[#allocation2 + $0x160] sm:$0xff]
    %v754 = vld [vmem:[#allocation2 + $0x168] sm:$0xff]
    %v755 = vld [vmem:[#allocation2 + $0x170] sm:$0xff]
    %v756 = vld [vmem:[#allocation2 + $0x178] sm:$0xff]
    %v757 = vld [vmem:[#allocation2 + $0x180] sm:$0xff]
    %v758 = vld [vmem:[#allocation2 + $0x188] sm:$0xff]
    %v759 = vld [vmem:[#allocation2 + $0x190] sm:$0xff]
    %v760 = vld [vmem:[#allocation2 + $0x198] sm:$0xff]
    %v761 = vld [vmem:[#allocation2 + $0x1a0] sm:$0xff]
    %v762 = vld [vmem:[#allocation2 + $0x1a8] sm:$0xff]
    %v763 = vld [vmem:[#allocation2 + $0x1b0] sm:$0xff]
    %v764 = vld [vmem:[#allocation2 + $0x1b8] sm:$0xff]
    %v765 = vld [vmem:[#allocation2 + $0x1c0] sm:$0xff]
    %v766 = vld [vmem:[#allocation2 + $0x1c8] sm:$0xff]
    %v767 = vld [vmem:[#allocation2 + $0x1d0] sm:$0xff]
    %v768 = vld [vmem:[#allocation2 + $0x1d8] sm:$0xff]
    %v769 = vld [vmem:[#allocation2 + $0x1e0] sm:$0xff]
    %v770 = vld [vmem:[#allocation2 + $0x1e8] sm:$0xff]
    %v771 = vld [vmem:[#allocation2 + $0x1f0] sm:$0xff]
    %v772 = vld [vmem:[#allocation2 + $0x1f8] sm:$0xff]
    %v773 = vld [vmem:[#allocation2 + $0x200] sm:$0xff]
    %v774 = vld [vmem:[#allocation2 + $0x208] sm:$0xff]
    %v775 = vld [vmem:[#allocation2 + $0x210] sm:$0xff]
    %v776 = vld [vmem:[#allocation2 + $0x218] sm:$0xff]
    %v777 = vld [vmem:[#allocation2 + $0x220] sm:$0xff]
    %v778 = vld [vmem:[#allocation2 + $0x228] sm:$0xff]
    %v779 = vld [vmem:[#allocation2 + $0x230] sm:$0xff]
    %v780 = vld [vmem:[#allocation2 + $0x238] sm:$0xff]
    %v781 = vld [vmem:[#allocation2 + $0x240] sm:$0xff]
    %v782 = vld [vmem:[#allocation2 + $0x248] sm:$0xff]
    %v783 = vld [vmem:[#allocation2 + $0x250] sm:$0xff]
    %v784 = vld [vmem:[#allocation2 + $0x258] sm:$0xff]
    %v785 = vld [vmem:[#allocation2 + $0x260] sm:$0xff]
    %v786 = vld [vmem:[#allocation2 + $0x268] sm:$0xff]
    %v787 = vld [vmem:[#allocation2 + $0x270] sm:$0xff]
    %v788 = vld [vmem:[#allocation2 + $0x278] sm:$0xff]
    %v789 = vld [vmem:[#allocation2 + $0x280] sm:$0xff]
    %v790 = vld [vmem:[#allocation2 + $0x288] sm:$0xff]
    %v791 = vld [vmem:[#allocation2 + $0x290] sm:$0xff]
    %v792 = vld [vmem:[#allocation2 + $0x298] sm:$0xff]
    %v793 = vld [vmem:[#allocation2 + $0x2a0] sm:$0xff]
    %v794 = vld [vmem:[#allocation2 + $0x2a8] sm:$0xff]
    %v795 = vld [vmem:[#allocation2 + $0x2b0] sm:$0xff]
    %v796 = vld [vmem:[#allocation2 + $0x2b8] sm:$0xff]
    %v797 = vld [vmem:[#allocation2 + $0x2c0] sm:$0xff]
    %v798 = vld [vmem:[#allocation2 + $0x2c8] sm:$0xff]
    %v799 = vld [vmem:[#allocation2 + $0x2d0] sm:$0xff]
    %v800 = vld [vmem:[#allocation2 + $0x2d8] sm:$0xff]
    %v801 = vld [vmem:[#allocation2 + $0x2e0] sm:$0xff]
    %v802 = vld [vmem:[#allocation2 + $0x2e8] sm:$0xff]
    %v803 = vld [vmem:[#allocation2 + $0x2f0] sm:$0xff]
    %v804 = vld [vmem:[#allocation2 + $0x2f8] sm:$0xff]
    %v805 = vld [vmem:[#allocation2 + $0x300] sm:$0xff]
    %v806 = vld [vmem:[#allocation2 + $0x308] sm:$0xff]
    %v807 = vld [vmem:[#allocation2 + $0x310] sm:$0xff]
    %v808 = vld [vmem:[#allocation2 + $0x318] sm:$0xff]
    %v809 = vld [vmem:[#allocation2 + $0x320] sm:$0xff]
    %v810 = vld [vmem:[#allocation2 + $0x328] sm:$0xff]
    %v811 = vld [vmem:[#allocation2 + $0x330] sm:$0xff]
    %v812 = vld [vmem:[#allocation2 + $0x338] sm:$0xff]
    %v813 = vld [vmem:[#allocation2 + $0x340] sm:$0xff]
    %v814 = vld [vmem:[#allocation2 + $0x348] sm:$0xff]
    %v815 = vld [vmem:[#allocation2 + $0x350] sm:$0xff]
    %v816 = vld [vmem:[#allocation2 + $0x358] sm:$0xff]
    %v817 = vld [vmem:[#allocation2 + $0x360] sm:$0xff]
    %v818 = vld [vmem:[#allocation2 + $0x368] sm:$0xff]
    %v819 = vld [vmem:[#allocation2 + $0x370] sm:$0xff]
    %v820 = vld [vmem:[#allocation2 + $0x378] sm:$0xff]
    %v821 = vld [vmem:[#allocation2 + $0x380] sm:$0xff]
    %v822 = vld [vmem:[#allocation2 + $0x388] sm:$0xff]
    %v823 = vld [vmem:[#allocation2 + $0x390] sm:$0xff]
    %v824 = vld [vmem:[#allocation2 + $0x398] sm:$0xff]
    %v825 = vld [vmem:[#allocation2 + $0x3a0] sm:$0xff]
    %v826 = vld [vmem:[#allocation2 + $0x3a8] sm:$0xff]
    %v827 = vld [vmem:[#allocation2 + $0x3b0] sm:$0xff]
    %v828 = vld [vmem:[#allocation2 + $0x3b8] sm:$0xff]
    %v829 = vld [vmem:[#allocation2 + $0x3c0] sm:$0xff]
    %v830 = vld [vmem:[#allocation2 + $0x3c8] sm:$0xff]
    %v831 = vld [vmem:[#allocation2 + $0x3d0] sm:$0xff]
    %v832 = vld [vmem:[#allocation2 + $0x3d8] sm:$0xff]
    %v833 = vld [vmem:[#allocation2 + $0x3e0] sm:$0xff]
    %v834 = vld [vmem:[#allocation2 + $0x3e8] sm:$0xff]
    %v835 = vld [vmem:[#allocation2 + $0x3f0] sm:$0xff]
    %v836 = vld [vmem:[#allocation2 + $0x3f8] sm:$0xff]
    %837 = vmatprep.subr.bf16.mxu0 %v710
    %838 = vmatpush1.bf16.msra.mxu0 %v709
    %839 = vmatprep.subr.bf16.mxu0 %v712
    %840 = vmatpush1.bf16.msra.mxu0 %v711
    %841 = vmatprep.subr.bf16.mxu0 %v714
    %842 = vmatpush1.bf16.msra.mxu0 %v713
    %843 = vmatprep.subr.bf16.mxu0 %v716
    %844 = vmatpush1.bf16.msra.mxu0 %v715
    %845 = vmatprep.subr.bf16.mxu0 %v718
    %846 = vmatpush1.bf16.msra.mxu0 %v717
    %847 = vmatprep.subr.bf16.mxu0 %v720
    %848 = vmatpush1.bf16.msra.mxu0 %v719
    %849 = vmatprep.subr.bf16.mxu0 %v722
    %850 = vmatpush1.bf16.msra.mxu0 %v721
    %851 = vmatprep.subr.bf16.mxu0 %v724
    %852 = vmatpush1.bf16.msra.mxu0 %v723
    %853 = vmatprep.subr.bf16.mxu0 %v726
    %854 = vmatpush1.bf16.msra.mxu0 %v725
    %855 = vmatprep.subr.bf16.mxu0 %v728
    %856 = vmatpush1.bf16.msra.mxu0 %v727
    %857 = vmatprep.subr.bf16.mxu0 %v730
    %858 = vmatpush1.bf16.msra.mxu0 %v729
    %859 = vmatprep.subr.bf16.mxu0 %v732
    %860 = vmatpush1.bf16.msra.mxu0 %v731
    %861 = vmatprep.subr.bf16.mxu0 %v734
    %862 = vmatpush1.bf16.msra.mxu0 %v733
    %863 = vmatprep.subr.bf16.mxu0 %v736
    %864 = vmatpush1.bf16.msra.mxu0 %v735
    %865 = vmatprep.subr.bf16.mxu0 %v738
    %866 = vmatpush1.bf16.msra.mxu0 %v737
    %867 = vmatprep.subr.bf16.mxu0 %v740
    %868 = vmatpush1.bf16.msra.mxu0 %v739
    %869 = vmatprep.mubr.bf16.mxu0 %v702
    %870 = vmatmul.mubr.bf16.gmra.mrb[0].mxu0 %v701
    %v871 = vpop.f32.mrb[0].mxu0
    %v872 = vadd.f32 0.0, %v871
    %v873 = vpop.f32.mrb[0].mxu0
    %v874 = vadd.f32 0.0, %v873
    %v875 = vpop.f32.mrb[0].mxu0
    %v876 = vpop.f32.mrb[0].mxu0
    %877 = vdwg.mxu0
    %878 = vmatprep.subr.bf16.mxu0 %v742
    %879 = vmatpush1.bf16.msra.mxu0 %v741
    %880 = vmatprep.subr.bf16.mxu0 %v744
    %881 = vmatpush1.bf16.msra.mxu0 %v743
    %882 = vmatprep.subr.bf16.mxu0 %v746
    %883 = vmatpush1.bf16.msra.mxu0 %v745
    %884 = vmatprep.subr.bf16.mxu0 %v748
    %885 = vmatpush1.bf16.msra.mxu0 %v747
    %886 = vmatprep.subr.bf16.mxu0 %v750
    %887 = vmatpush1.bf16.msra.mxu0 %v749
    %888 = vmatprep.subr.bf16.mxu0 %v752
    %889 = vmatpush1.bf16.msra.mxu0 %v751
    %890 = vmatprep.subr.bf16.mxu0 %v754
    %891 = vmatpush1.bf16.msra.mxu0 %v753
    %892 = vmatprep.subr.bf16.mxu0 %v756
    %893 = vmatpush1.bf16.msra.mxu0 %v755
    %894 = vmatprep.subr.bf16.mxu0 %v758
    %895 = vmatpush1.bf16.msra.mxu0 %v757
    %896 = vmatprep.subr.bf16.mxu0 %v760
    %897 = vmatpush1.bf16.msra.mxu0 %v759
    %898 = vmatprep.subr.bf16.mxu0 %v762
    %899 = vmatpush1.bf16.msra.mxu0 %v761
    %900 = vmatprep.subr.bf16.mxu0 %v764
    %901 = vmatpush1.bf16.msra.mxu0 %v763
    %902 = vmatprep.subr.bf16.mxu0 %v766
    %903 = vmatpush1.bf16.msra.mxu0 %v765
    %904 = vmatprep.subr.bf16.mxu0 %v768
    %905 = vmatpush1.bf16.msra.mxu0 %v767
    %906 = vmatprep.subr.bf16.mxu0 %v770
    %907 = vmatpush1.bf16.msra.mxu0 %v769
    %908 = vmatprep.subr.bf16.mxu0 %v772
    %909 = vmatpush1.bf16.msra.mxu0 %v771
    %910 = vmatprep.mubr.bf16.mxu0 %v704
    %911 = vmatmul.mubr.bf16.gmra.mrb[0].mxu0 %v703
    %v912 = vpop.f32.mrb[0].mxu0
    %v913 = vadd.f32 %v872, %v912
    %v914 = vpop.f32.mrb[0].mxu0
    %v915 = vadd.f32 %v874, %v914
    %v916 = vpop.f32.mrb[0].mxu0
    %v917 = vpop.f32.mrb[0].mxu0
    %918 = vdwg.mxu0
    %919 = vmatprep.subr.bf16.mxu0 %v774
    %920 = vmatpush1.bf16.msra.mxu0 %v773
    %921 = vmatprep.subr.bf16.mxu0 %v776
    %922 = vmatpush1.bf16.msra.mxu0 %v775
    %923 = vmatprep.subr.bf16.mxu0 %v778
    %924 = vmatpush1.bf16.msra.mxu0 %v777
    %925 = vmatprep.subr.bf16.mxu0 %v780
    %926 = vmatpush1.bf16.msra.mxu0 %v779
    %927 = vmatprep.subr.bf16.mxu0 %v782
    %928 = vmatpush1.bf16.msra.mxu0 %v781
    %929 = vmatprep.subr.bf16.mxu0 %v784
    %930 = vmatpush1.bf16.msra.mxu0 %v783
    %931 = vmatprep.subr.bf16.mxu0 %v786
    %932 = vmatpush1.bf16.msra.mxu0 %v785
    %933 = vmatprep.subr.bf16.mxu0 %v788
    %934 = vmatpush1.bf16.msra.mxu0 %v787
    %935 = vmatprep.subr.bf16.mxu0 %v790
    %936 = vmatpush1.bf16.msra.mxu0 %v789
    %937 = vmatprep.subr.bf16.mxu0 %v792
    %938 = vmatpush1.bf16.msra.mxu0 %v791
    %939 = vmatprep.subr.bf16.mxu0 %v794
    %940 = vmatpush1.bf16.msra.mxu0 %v793
    %941 = vmatprep.subr.bf16.mxu0 %v796
    %942 = vmatpush1.bf16.msra.mxu0 %v795
    %943 = vmatprep.subr.bf16.mxu0 %v798
    %944 = vmatpush1.bf16.msra.mxu0 %v797
    %945 = vmatprep.subr.bf16.mxu0 %v800
    %946 = vmatpush1.bf16.msra.mxu0 %v799
    %947 = vmatprep.subr.bf16.mxu0 %v802
    %948 = vmatpush1.bf16.msra.mxu0 %v801
    %949 = vmatprep.subr.bf16.mxu0 %v804
    %950 = vmatpush1.bf16.msra.mxu0 %v803
    %951 = vmatprep.mubr.bf16.mxu0 %v706
    %952 = vmatmul.mubr.bf16.gmra.mrb[0].mxu0 %v705
    %v953 = vpop.f32.mrb[0].mxu0
    %v954 = vadd.f32 %v913, %v953
    %v955 = vpop.f32.mrb[0].mxu0
    %v956 = vadd.f32 %v915, %v955
    %v957 = vpop.f32.mrb[0].mxu0
    %v958 = vpop.f32.mrb[0].mxu0
    %959 = vdwg.mxu0
    %960 = vmatprep.subr.bf16.mxu0 %v806
    %961 = vmatpush1.bf16.msra.mxu0 %v805
    %962 = vmatprep.subr.bf16.mxu0 %v808
    %963 = vmatpush1.bf16.msra.mxu0 %v807
    %964 = vmatprep.subr.bf16.mxu0 %v810
    %965 = vmatpush1.bf16.msra.mxu0 %v809
    %966 = vmatprep.subr.bf16.mxu0 %v812
    %967 = vmatpush1.bf16.msra.mxu0 %v811
    %968 = vmatprep.subr.bf16.mxu0 %v814
    %969 = vmatpush1.bf16.msra.mxu0 %v813
    %970 = vmatprep.subr.bf16.mxu0 %v816
    %971 = vmatpush1.bf16.msra.mxu0 %v815
    %972 = vmatprep.subr.bf16.mxu0 %v818
    %973 = vmatpush1.bf16.msra.mxu0 %v817
    %974 = vmatprep.subr.bf16.mxu0 %v820
    %975 = vmatpush1.bf16.msra.mxu0 %v819
    %976 = vmatprep.subr.bf16.mxu0 %v822
    %977 = vmatpush1.bf16.msra.mxu0 %v821
    %978 = vmatprep.subr.bf16.mxu0 %v824
    %979 = vmatpush1.bf16.msra.mxu0 %v823
    %980 = vmatprep.subr.bf16.mxu0 %v826
    %981 = vmatpush1.bf16.msra.mxu0 %v825
    %982 = vmatprep.subr.bf16.mxu0 %v828
    %983 = vmatpush1.bf16.msra.mxu0 %v827
    %984 = vmatprep.subr.bf16.mxu0 %v830
    %985 = vmatpush1.bf16.msra.mxu0 %v829
    %986 = vmatprep.subr.bf16.mxu0 %v832
    %987 = vmatpush1.bf16.msra.mxu0 %v831
    %988 = vmatprep.subr.bf16.mxu0 %v834
    %989 = vmatpush1.bf16.msra.mxu0 %v833
    %990 = vmatprep.subr.bf16.mxu0 %v836
    %991 = vmatpush1.bf16.msra.mxu0 %v835
    %992 = vmatprep.mubr.bf16.mxu0 %v708
    %993 = vmatmul.mubr.bf16.gmra.mrb[0].mxu0 %v707
    %v994 = vpop.f32.mrb[0].mxu0
    %v995 = vadd.f32 %v954, %v994
    %v996 = vpop.f32.mrb[0].mxu0
    %v997 = vadd.f32 %v956, %v996
    %v998 = vpop.f32.mrb[0].mxu0
    %v999 = vpop.f32.mrb[0].mxu0
    %1000 = vdwg.mxu0
    %v1001 = vrot.slane %v995, 4
    %v1002 = vadd.f32 %v995, %v1001
    %v1003 = vrot.slane %v1002, 2
    %v1004 = vadd.f32 %v1002, %v1003
    %v1005 = vrot.slane %v1004, 1
    %v1006 = vadd.f32 %v1004, %v1005
    %v1007 = vrot.slane %v997, 4
    %v1008 = vadd.f32 %v997, %v1007
    %v1009 = vrot.slane %v1008, 2
    %v1010 = vadd.f32 %v1008, %v1009
    %v1011 = vrot.slane %v1010, 1
    %v1012 = vadd.f32 %v1010, %v1011
    %v1013 = vmul.f32 %v995, %v995
    %v1014 = vmul.f32 %v997, %v997
    %v1015 = vrot.slane %v1013, 4
    %v1016 = vadd.f32 %v1013, %v1015
    %v1017 = vrot.slane %v1016, 2
    %v1018 = vadd.f32 %v1016, %v1017
    %v1019 = vrot.slane %v1018, 1
    %v1020 = vadd.f32 %v1018, %v1019
    %v1021 = vrot.slane %v1014, 4
    %v1022 = vadd.f32 %v1014, %v1021
    %v1023 = vrot.slane %v1022, 2
    %v1024 = vadd.f32 %v1022, %v1023
    %v1025 = vrot.slane %v1024, 1
    %v1026 = vadd.f32 %v1024, %v1025
    %v1027 = vmul.f32 %v1006, 0.125
    %v1028 = vmul.f32 %v1012, 0.125
    %v1029 = vmul.f32 %v1020, 0.125
    %v1030 = vmul.f32 %v1026, 0.125
    %v1031 = vmul.f32 %v1027, %v1027
    %v1032 = vmul.f32 %v1028, %v1028
    %v1033 = vsub.f32 %v1029, %v1031
    %v1034 = vsub.f32 %v1030, %v1032
    %v1035 = vld [vmem:[%s5] sm:$0x3]
    %v1036 = vadd.f32 %v1033, 1e-05
    %v1037 = vadd.f32 %v1034, 1e-05
    %v1038 = vrsqrt.pop %v1036
    %v1039 = vrsqrt.pop %v1037
    %v1042 = vcombine.low %v1038, %v1039
    %v1044 = vunpack.c.l.s4 1966171168
    %v1045 = vunpack.c.0.s8 %v1044
    %v1046 = vlaneseq
    %v1047 = vshrl.u32 %v1046, 7
    %v1048 = vsub.s32 %v1045, %v1047
    %v1049 = vrot.slane %v1042, %v1048
    %v1051 = vunpack.c.l.s4 1966171168
    %v1052 = vunpack.c.0.s8 %v1051
    %v1053 = vlaneseq
    %v1054 = vshrl.u32 %v1053, 7
    %v1055 = vsub.s32 %v1052, %v1054
    %v1056 = vrot.slane %v1049, %v1055
    %v1058 = vmul.f32 %v1035, %v1056
    %v1059 = vsub.f32 %v995, %v1027
    %v1060 = vsub.f32 %v997, %v1028
    %v1062 = vlaneseq
    %v1063 = vshrl.u32 %v1062, 7
    %v1064 = vsub.s32 0, %v1063
    %v1065 = vrot.slane %v1058, %v1064
    %v1066 = vlaneseq
    %v1067 = vshrl.u32 %v1066, 7
    %v1068 = vsub.s32 1, %v1067
    %v1069 = vrot.slane %v1058, %v1068
    %v1072 = vmul.f32 %v1059, %v1065
    %v1073 = vmul.f32 %v1060, %v1069
    %v1074 = vld [vmem:[%s6] sm:$0x3]
    %v1076 = vlaneseq
    %v1077 = vshrl.u32 %v1076, 7
    %v1078 = vsub.s32 0, %v1077
    %v1079 = vrot.slane %v1074, %v1078
    %v1080 = vlaneseq
    %v1081 = vshrl.u32 %v1080, 7
    %v1082 = vsub.s32 1, %v1081
    %v1083 = vrot.slane %v1074, %v1082
    %v1086 = vadd.f32 %v1072, %v1079
    %v1087 = vadd.f32 %v1073, %v1083
    %v1088 = vmax.f32 %v1086, 0.0
    %v1089 = vmax.f32 %v1087, 0.0
    %v1090 = vld [vmem:[%s7] sm:$0x3]
    %v1092 = vlaneseq
    %v1093 = vshrl.u32 %v1092, 7
    %v1094 = vsub.s32 0, %v1093
    %v1095 = vrot.slane %v1090, %v1094
    %v1096 = vlaneseq
    %v1097 = vshrl.u32 %v1096, 7
    %v1098 = vsub.s32 1, %v1097
    %v1099 = vrot.slane %v1090, %v1098
    %v1102 = vmul.f32 %v1088, %v1095
    %v1103 = vmul.f32 %v1089, %v1099
    %v1104 = vadd.f32 %v1102, %v1103
    %1105 = vadd.xlane.f32.xlu0 %v1104
    %v1106 = vpop.xlane.xlu0 %1105
    %s1107 = sld [smem:[#allocation4]]
    %v1108 = vstv %s1107
    %v1109 = vadd.f32 %v1106, %v1108
    %vm1110 = vcmask 7168
    %1111 = vst.msk [vmem:[%s9] sm:$0xff] %vm1110, %v1109
    // Predicated region
    $region46: #{tpu_custom_call.1} parent=1 // pred_check
      _
    $region47: #{tpu_custom_call.1} parent=1 // pred_check_branch
      %1113 = sbr.rel (0) target = $region49
    $region48: #{tpu_custom_call.1} parent=1 // pred_region
      _
    $region49: #{tpu_custom_call.1} parent=1 // pred_fallthru
      _
    // Predicated region
    $region50: #{tpu_custom_call.1} parent=1 // pred_check
      _
    $region51: #{tpu_custom_call.1} parent=1 // pred_check_branch
      %1115 = sbr.rel (0) target = $region53
    $region52: #{tpu_custom_call.1} parent=1 // pred_region
      _
    $region53: #{tpu_custom_call.1} parent=1 // pred_fallthru
      _
    %1116 = vsyncpa [#allocation6], 1
    %1117 = vsyncpa [#allocation8], 1
  %1118 = vsyncmov [#allocation3]
  %s1119 = vpop.sfrf %1118
  %p1120 = scmp.eq.s32.totalorder %s1119, 0
  %p1121 = pneg %p1120
  %1123 = shalt.err (%p1121)

</llo_original>
